<compile_context>
chip_gen: v7x
topology: tpu7x:2x2x1
jax: 0.10.0
libtpu: 0.0.40
codegen_flags: <defaults>
</compile_context>

<pallas_src>
import functools

import jax
import jax.numpy as jnp
from jax.experimental import pallas as pl
from jax.experimental.pallas import tpu as pltpu


def _round_up(x: int, m: int) -> int:
    return ((x + m - 1) // m) * m


@functools.lru_cache(maxsize=None)
def _vmem_params():
    """(block_budget_bytes, vmem_limit_bytes), generation-aware.

    128 MiB VMEM parts (v5e/v6e): ~8 MiB f32 logits blocks, 96 MiB scoped limit.
    64 MiB parts (v7x per-TC):    ~4 MiB f32 logits blocks, 48 MiB scoped limit.
    """
    cap = 128 << 20
    try:
        info = pltpu.get_tpu_info()
        cap_attr = getattr(info, "vmem_capacity_bytes", None)
        if cap_attr:
            cap = int(cap_attr)
    except Exception:
        pass  # fall back to the 128 MiB assumption
    block_budget = (8 << 20) if cap >= (96 << 20) else (4 << 20)
    vmem_limit = int(min((cap * 3) // 4, 112 << 20))
    return block_budget, vmem_limit


def _pick_tile_n(n: int, f32_bytes_per_row: int, sublane_mult: int,
                 block_budget_bytes: int) -> int:
    """Largest row tile (multiple of sublane_mult) whose f32 compute footprint
    per block stays under the per-generation budget. If everything fits in one
    block, split into two tiles so the "parallel" grid axis can still shard
    across v7x's two TensorCores."""
    t = block_budget_bytes // max(f32_bytes_per_row, 1)
    t = max(sublane_mult, (t // sublane_mult) * sublane_mult)
    if n <= t:
        half = -(-n // 2)
        t = max(sublane_mult, _round_up(half, sublane_mult))
    return t


def _row_ce(x, onehot):
    """Per-row cross entropy from f32 logits x (TILE_N, C) and bool onehot.
    Uses only the shifted chain xm = x - max(x):
        row_loss = log(sum(exp(xm))) - xm[target] == logsumexp(x) - x[target]."""
    m = jnp.max(x, axis=-1, keepdims=True)
    xm = x - m
    lse = jnp.log(jnp.sum(jnp.exp(xm), axis=-1, keepdims=True))
    picked = jnp.sum(jnp.where(onehot, xm, 0.0), axis=-1, keepdims=True)
    return lse - picked                                            # (TILE_N, 1)


def _masks(tgt_ref, tile_n, c, n_rows):
    tgt = tgt_ref[...]                                             # (TILE_N, 1) int32
    cls = jax.lax.broadcasted_iota(jnp.int32, (1, c), 1)           # (1, C) lane iota
    onehot = cls == tgt                                            # (TILE_N, C) bool
    row_idx = pl.program_id(0) * tile_n + jax.lax.broadcasted_iota(
        jnp.int32, (tile_n, 1), 0)
    valid = row_idx < n_rows                                       # ragged-tail mask
    return onehot, valid


def _complex_ce_tile_kernel(xr_ref, xi_ref, tgt_ref, out_ref, *, n_rows: int):
    """xr_ref/xi_ref: (TILE_N, C) float planes; tgt_ref: (TILE_N, 1) int32.
    Writes the per-tile sum over valid rows of (CE_real_row + CE_imag_row)."""
    tile_n, c = xr_ref.shape
    onehot, valid = _masks(tgt_ref, tile_n, c, n_rows)
    row_loss = (_row_ce(xr_ref[...].astype(jnp.float32), onehot)
                + _row_ce(xi_ref[...].astype(jnp.float32), onehot))
    # Select (not multiply): garbage tail rows may carry NaN/Inf and must be discarded.
    out_ref[...] = jnp.sum(jnp.where(valid, row_loss, 0.0)).reshape(1, 1)


def _real_ce_tile_kernel(x_ref, tgt_ref, out_ref, *, n_rows: int):
    """x_ref: (TILE_N, C) float logits (any float dtype); tgt_ref: (TILE_N, 1) int32."""
    tile_n, c = x_ref.shape
    onehot, valid = _masks(tgt_ref, tile_n, c, n_rows)
    row_loss = _row_ce(x_ref[...].astype(jnp.float32), onehot)
    out_ref[...] = jnp.sum(jnp.where(valid, row_loss, 0.0)).reshape(1, 1)


def complex_cross_entropy_loss(inputs, targets, *, tile_n=None):
    """JAX/Pallas equivalent of ComplexCrossEntropyLoss.forward for (N, C) logits.

    `inputs` may be:
      * a complex (N, C) array                 -> (CE(real) + CE(imag)) / 2
      * a (real, imag) tuple of (N, C) arrays  -> same, with no complex->planar
        staging pass (preferred for large, memory-bound shapes)
      * a real (N, C) array                    -> CE(inputs)
    """
    block_budget, vmem_limit = _vmem_params()

    planar = isinstance(inputs, (tuple, list))
    if planar or jnp.iscomplexobj(inputs):
        if planar:
            xr, xi = inputs
        else:
            if inputs.ndim != 2:
                raise ValueError("only (N, C) logits are supported")
            xr = jnp.real(inputs)
            xi = jnp.imag(inputs)
        if xr.ndim != 2 or xi.shape != xr.shape:
            raise ValueError("real/imag planes must both be (N, C)")
        n, c = xr.shape
        targets_2d = targets.astype(jnp.int32).reshape(n, 1)
        tn = tile_n if tile_n is not None else _pick_tile_n(
            n, 2 * c * 4, 8, block_budget)
        num_tiles = pl.cdiv(n, tn)
        kernel = functools.partial(_complex_ce_tile_kernel, n_rows=n)
        partials = pl.pallas_call(
            kernel,
            out_shape=jax.ShapeDtypeStruct((num_tiles, 1), jnp.float32),
            grid=(num_tiles,),
            in_specs=[
                pl.BlockSpec((tn, c), lambda i: (i, 0)),
                pl.BlockSpec((tn, c), lambda i: (i, 0)),
                pl.BlockSpec((tn, 1), lambda i: (i, 0)),
            ],
            out_specs=pl.BlockSpec((1, 1), lambda i: (i, 0)),
            compiler_params=pltpu.CompilerParams(
                dimension_semantics=("parallel",),
                vmem_limit_bytes=vmem_limit),
            cost_estimate=pl.CostEstimate(
                flops=12 * n * c,
                transcendentals=2 * n * c + 2 * n,
                bytes_accessed=2 * n * c * 4 + n * 4 + num_tiles * 4),
        )(xr, xi, targets_2d)
        return jnp.sum(partials) / jnp.float32(2 * n)
    else:
        if inputs.ndim != 2:
            raise ValueError("only (N, C) logits are supported")
        x = inputs  # keep HBM dtype (bf16 stays 2 B/elem); kernel upcasts in-register
        n, c = x.shape
        targets_2d = targets.astype(jnp.int32).reshape(n, 1)
        itemsize = jnp.dtype(x.dtype).itemsize
        sublane_mult = max(8, 32 // itemsize)
        tn = tile_n if tile_n is not None else _pick_tile_n(
            n, c * 4, sublane_mult, block_budget)
        num_tiles = pl.cdiv(n, tn)
        kernel = functools.partial(_real_ce_tile_kernel, n_rows=n)
        partials = pl.pallas_call(
            kernel,
            out_shape=jax.ShapeDtypeStruct((num_tiles, 1), jnp.float32),
            grid=(num_tiles,),
            in_specs=[
                pl.BlockSpec((tn, c), lambda i: (i, 0)),
                pl.BlockSpec((tn, 1), lambda i: (i, 0)),
            ],
            out_specs=pl.BlockSpec((1, 1), lambda i: (i, 0)),
            compiler_params=pltpu.CompilerParams(
                dimension_semantics=("parallel",),
                vmem_limit_bytes=vmem_limit),
            cost_estimate=pl.CostEstimate(
                flops=6 * n * c,
                transcendentals=n * c + n,
                bytes_accessed=n * c * itemsize + n * 4 + num_tiles * 4),
        )(x, targets_2d)
        return jnp.sum(partials) / jnp.float32(n)


def _reference_ce(logits, targets):
    """Pure-JAX reference for nn.CrossEntropyLoss (mean reduction)."""
    logp = jax.nn.log_softmax(logits.astype(jnp.float32), axis=-1)
    picked = jnp.take_along_axis(
        logp, targets.astype(jnp.int32).reshape(-1, 1), axis=-1)[:, 0]
    return -jnp.mean(picked)


if __name__ == "__main__":
    key = jax.random.PRNGKey(0)
    k1, k2, k3, k4, k5, k6 = jax.random.split(key, 6)

    # Small shapes consistent with the module: (batch, classes) complex logits.
    N, C = 8, 32
    real = jax.random.normal(k1, (N, C), dtype=jnp.float32)
    imag = jax.random.normal(k2, (N, C), dtype=jnp.float32)
    inputs = jax.lax.complex(real, imag)                            # complex64
    targets = jax.random.randint(k3, (N,), 0, C, dtype=jnp.int32)
    ref = (_reference_ce(real, targets) + _reference_ce(imag, targets)) / 2.0

    # Complex path (the branch the module was built for).
    loss = jax.block_until_ready(complex_cross_entropy_loss(inputs, targets))
    assert jnp.allclose(loss, ref, rtol=1e-4, atol=1e-5), (loss, ref)

    # Planar fast path: producer-supplied (real, imag) -> no staging copy.
    loss_p = jax.block_until_ready(complex_cross_entropy_loss((real, imag), targets))
    assert jnp.allclose(loss_p, ref, rtol=1e-4, atol=1e-5), (loss_p, ref)

    # Real (non-complex) branch.
    loss_r = jax.block_until_ready(complex_cross_entropy_loss(real, targets))
    ref_r = _reference_ce(real, targets)
    assert jnp.allclose(loss_r, ref_r, rtol=1e-4, atol=1e-5), (loss_r, ref_r)

    # Multi-tile + ragged-tail path: default (auto) tiling and a forced small tile.
    N2, C2 = 200, 256
    r2 = jax.random.normal(k4, (N2, C2), dtype=jnp.float32)
    i2 = jax.random.normal(k5, (N2, C2), dtype=jnp.float32)
    t2 = jax.random.randint(k6, (N2,), 0, C2, dtype=jnp.int32)
    ref2 = (_reference_ce(r2, t2) + _reference_ce(i2, t2)) / 2.0

    loss2 = jax.block_until_ready(
        complex_cross_entropy_loss(jax.lax.complex(r2, i2), t2))   # auto 2-tile split
    assert jnp.allclose(loss2, ref2, rtol=1e-4, atol=1e-5), (loss2, ref2)

    loss2f = jax.block_until_ready(
        complex_cross_entropy_loss(jax.lax.complex(r2, i2), t2, tile_n=64))
    assert jnp.allclose(loss2f, ref2, rtol=1e-4, atol=1e-5), (loss2f, ref2)

    loss2r = jax.block_until_ready(complex_cross_entropy_loss(r2, t2, tile_n=64))
    ref2r = _reference_ce(r2, t2)
    assert jnp.allclose(loss2r, ref2r, rtol=1e-4, atol=1e-5), (loss2r, ref2r)

    print("KERNEL_OK")
</pallas_src>

<mosaic_0001>
module attributes {stable_mosaic.version = 11 : i64} {
  func.func @_complex_ce_tile_kernel(%arg0: i32, %arg1: memref<8x32xf32, #tpu.memory_space<vmem>>, %arg2: memref<8x32xf32, #tpu.memory_space<vmem>>, %arg3: memref<8x1xi32, #tpu.memory_space<vmem>>, %arg4: memref<1x1xf32, #tpu.memory_space<vmem>>) attributes {dimension_semantics = [#tpu.dimension_semantics<parallel>], iteration_bounds = array<i64: 1>, scalar_prefetch = 0 : i64, scratch_operands = 0 : i64, tpu.core_type = #tpu.core_type<tc>, window_params = [{transform_indices = @transform_0, window_bounds = array<i64: 8, 32>}, {transform_indices = @transform_1, window_bounds = array<i64: 8, 32>}, {transform_indices = @transform_2, window_bounds = array<i64: 8, 1>}, {transform_indices = @transform_3, window_bounds = array<i64: 1, 1>}]} {
    %c0 = arith.constant 0 : index
    %c0_0 = arith.constant 0 : index
    %0 = vector.load %arg3[%c0, %c0_0] : memref<8x1xi32, #tpu.memory_space<vmem>>, vector<8x1xi32>
    %1 = tpu.iota {dimensions = array<i32: 1>} : vector<1x32xi32>
    %2 = vector.broadcast %1 : vector<1x32xi32> to vector<8x32xi32>
    %3 = vector.broadcast %0 : vector<8x1xi32> to vector<8x32xi32>
    %4 = arith.cmpi eq, %2, %3 : vector<8x32xi32>
    %c8_i32 = arith.constant 8 : i32
    %5 = arith.muli %arg0, %c8_i32 : i32
    %6 = tpu.iota {dimensions = array<i32: 0>} : vector<8x1xi32>
    %7 = vector.broadcast %5 : i32 to vector<8x1xi32>
    %8 = arith.addi %7, %6 : vector<8x1xi32>
    %c8_i32_1 = arith.constant 8 : i32
    %9 = vector.broadcast %c8_i32_1 : i32 to vector<8x1xi32>
    %10 = arith.cmpi slt, %8, %9 : vector<8x1xi32>
    %c0_2 = arith.constant 0 : index
    %c0_3 = arith.constant 0 : index
    %11 = vector.load %arg1[%c0_2, %c0_3] : memref<8x32xf32, #tpu.memory_space<vmem>>, vector<8x32xf32>
    %cst = arith.constant dense<0xFF800000> : vector<8xf32>
    %12 = vector.multi_reduction <maximumf>, %11, %cst [1] : vector<8x32xf32> to vector<8xf32>
    %13 = vector.shape_cast %12 : vector<8xf32> to vector<8x1xf32>
    %14 = vector.broadcast %13 : vector<8x1xf32> to vector<8x32xf32>
    %15 = arith.subf %11, %14 : vector<8x32xf32>
    %16 = math.exp %15 : vector<8x32xf32>
    %cst_4 = arith.constant dense<0.000000e+00> : vector<8xf32>
    %17 = vector.multi_reduction <add>, %16, %cst_4 [1] : vector<8x32xf32> to vector<8xf32>
    %18 = vector.shape_cast %17 : vector<8xf32> to vector<8x1xf32>
    %19 = math.log %18 : vector<8x1xf32>
    %cst_5 = arith.constant 0.000000e+00 : f32
    %20 = vector.broadcast %cst_5 : f32 to vector<8x32xf32>
    %21 = arith.select %4, %15, %20 : vector<8x32xi1>, vector<8x32xf32>
    %cst_6 = arith.constant dense<0.000000e+00> : vector<8xf32>
    %22 = vector.multi_reduction <add>, %21, %cst_6 [1] : vector<8x32xf32> to vector<8xf32>
    %23 = vector.shape_cast %22 : vector<8xf32> to vector<8x1xf32>
    %24 = arith.subf %19, %23 : vector<8x1xf32>
    %c0_7 = arith.constant 0 : index
    %c0_8 = arith.constant 0 : index
    %25 = vector.load %arg2[%c0_7, %c0_8] : memref<8x32xf32, #tpu.memory_space<vmem>>, vector<8x32xf32>
    %cst_9 = arith.constant dense<0xFF800000> : vector<8xf32>
    %26 = vector.multi_reduction <maximumf>, %25, %cst_9 [1] : vector<8x32xf32> to vector<8xf32>
    %27 = vector.shape_cast %26 : vector<8xf32> to vector<8x1xf32>
    %28 = vector.broadcast %27 : vector<8x1xf32> to vector<8x32xf32>
    %29 = arith.subf %25, %28 : vector<8x32xf32>
    %30 = math.exp %29 : vector<8x32xf32>
    %cst_10 = arith.constant dense<0.000000e+00> : vector<8xf32>
    %31 = vector.multi_reduction <add>, %30, %cst_10 [1] : vector<8x32xf32> to vector<8xf32>
    %32 = vector.shape_cast %31 : vector<8xf32> to vector<8x1xf32>
    %33 = math.log %32 : vector<8x1xf32>
    %cst_11 = arith.constant 0.000000e+00 : f32
    %34 = vector.broadcast %cst_11 : f32 to vector<8x32xf32>
    %35 = arith.select %4, %29, %34 : vector<8x32xi1>, vector<8x32xf32>
    %cst_12 = arith.constant dense<0.000000e+00> : vector<8xf32>
    %36 = vector.multi_reduction <add>, %35, %cst_12 [1] : vector<8x32xf32> to vector<8xf32>
    %37 = vector.shape_cast %36 : vector<8xf32> to vector<8x1xf32>
    %38 = arith.subf %33, %37 : vector<8x1xf32>
    %39 = arith.addf %24, %38 : vector<8x1xf32>
    %cst_13 = arith.constant 0.000000e+00 : f32
    %40 = vector.broadcast %cst_13 : f32 to vector<8x1xf32>
    %41 = arith.select %10, %39, %40 : vector<8x1xi1>, vector<8x1xf32>
    %42 = vector.shape_cast %41 : vector<8x1xf32> to vector<1x8x1xf32>
    %cst_14 = arith.constant dense<0.000000e+00> : vector<1xf32>
    %43 = vector.multi_reduction <add>, %42, %cst_14 [1, 2] : vector<1x8x1xf32> to vector<1xf32>
    %44 = vector.shape_cast %43 : vector<1xf32> to vector<1x1x1xf32>
    %45 = vector.extract %44[0, 0, 0] : f32 from vector<1x1x1xf32>
    %46 = vector.broadcast %45 : f32 to vector<1x1xf32>
    %c0_15 = arith.constant 0 : index
    %c0_16 = arith.constant 0 : index
    %47 = vector.load %arg4[%c0_15, %c0_16] : memref<1x1xf32, #tpu.memory_space<vmem>>, vector<1x1xf32>
    tpu.vector_store %arg4[%c0_15, %c0_16], %46 {strides = array<i32>} : memref<1x1xf32, #tpu.memory_space<vmem>>, vector<1x1xf32>,
    return
  }
  func.func @transform_0(%arg0: i32) -> (i32, i32) {
    %c0_i32 = arith.constant 0 : i32
    %c0_i32_0 = arith.constant 0 : i32
    return %arg0, %c0_i32 : i32, i32
  }
  func.func @transform_1(%arg0: i32) -> (i32, i32) {
    %c0_i32 = arith.constant 0 : i32
    %c0_i32_0 = arith.constant 0 : i32
    return %arg0, %c0_i32 : i32, i32
  }
  func.func @transform_2(%arg0: i32) -> (i32, i32) {
    %c0_i32 = arith.constant 0 : i32
    %c0_i32_0 = arith.constant 0 : i32
    return %arg0, %c0_i32 : i32, i32
  }
  func.func @transform_3(%arg0: i32) -> (i32, i32) {
    %c0_i32 = arith.constant 0 : i32
    %c0_i32_0 = arith.constant 0 : i32
    return %arg0, %c0_i32 : i32, i32
  }
}

</mosaic_0001>

<llo_original>
// kernel: tpu_custom_call.1
$region0: #{tpu_custom_call.1}
  #allocation0 [shape = 'u32[]', space=smem, size = 0x4, offset = 0x4, fixed_abs, tag = 'smem constant byte address 0x4 - core index']
  #allocation1 [shape = 'u32[144,128]{1,0:T(1,128)}', space=vmem, size = 0x12000, scoped, tag = 'internal scratch']
  %s0 = inlined_call_operand.hbm [shape: f32[8,32], index: 0, kind: input, shape index: {}]
  %s1 = inlined_call_operand.hbm [shape: f32[8,32], index: 1, kind: input, shape index: {}]
  %s2 = inlined_call_operand.hbm [shape: s32[8,1], index: 2, kind: input, shape index: {}]
  %s3 = inlined_call_operand.hbm [shape: f32[1,1], index: 3, kind: output, shape index: {}]
  %s4 = sld [smem:[#allocation0]]
  $region34: #{tpu_custom_call.1} parent=0
    _
  %s6 = ssub.s32 1, %s4
  %s7 = scalar_select 0, %s6, %s4
  $region1: #{tpu_custom_call.1} parent=0
    #allocation2 [shape = 'u8[4096]{0}', space=vmem, size = 0x1000, scoped, tag = 'input window, operand 0, single buffered']
    #allocation3 [shape = 's32[1]{0}', space=sflag, size = 0x4, scoped, tag = 'scoped memory for tpu_custom_call.1']
    #allocation4 [shape = 's32[1]{0}', space=sflag, size = 0x4, scoped, tag = 'scoped memory for tpu_custom_call.1']
    #allocation5 [shape = 'u8[4096]{0}', space=vmem, size = 0x1000, scoped, tag = 'input window, operand 1, single buffered']
    #allocation6 [shape = 's32[1]{0}', space=sflag, size = 0x4, scoped, tag = 'scoped memory for tpu_custom_call.1']
    #allocation7 [shape = 'u8[4096]{0}', space=vmem, size = 0x1000, scoped, tag = 'input window, operand 2, single buffered']
    #allocation8 [shape = 'u8[512]{0}', space=vmem, size = 0x400, scoped, tag = 'output window, operand 0, single buffered']
    %8 = vsyncpa [#allocation3], 0
    %9 = vsyncpa [#allocation6], 0
    %10 = vsyncpa [#allocation4], 0
    // Predicated region
    $region2: #{tpu_custom_call.1} parent=1 // pred_check
      _
    $region3: #{tpu_custom_call.1} parent=1 // pred_check_branch
      %12 = sbr.rel (0) target = $region5
    $region4: #{tpu_custom_call.1} parent=1 // pred_region
      %s14 = ssub.s32 128, 128
      %15 = vsyncadd [#allocation3], %s14
      %s17 = sshll.u32 [#allocation2], 4
      %s18 = int_to_ptr.vmem [resolvable:$true] %s17
      %20 = dma.hbm_to_vmem [thread:$0]  %s0, 128, %s18, [#allocation3]
    $region5: #{tpu_custom_call.1} parent=1 // pred_fallthru
      _
    // Predicated region
    $region6: #{tpu_custom_call.1} parent=1 // pred_check
      _
    $region7: #{tpu_custom_call.1} parent=1 // pred_check_branch
      %22 = sbr.rel (0) target = $region9
    $region8: #{tpu_custom_call.1} parent=1 // pred_region
      %s24 = ssub.s32 128, 128
      %25 = vsyncadd [#allocation6], %s24
      %s27 = sshll.u32 [#allocation5], 4
      %s28 = int_to_ptr.vmem [resolvable:$true] %s27
      %30 = dma.hbm_to_vmem [thread:$0]  %s1, 128, %s28, [#allocation6]
    $region9: #{tpu_custom_call.1} parent=1 // pred_fallthru
      _
    // Predicated region
    $region10: #{tpu_custom_call.1} parent=1 // pred_check
      _
    $region11: #{tpu_custom_call.1} parent=1 // pred_check_branch
      %32 = sbr.rel (0) target = $region13
    $region12: #{tpu_custom_call.1} parent=1 // pred_region
      %s34 = ssub.s32 128, 128
      %35 = vsyncadd [#allocation6], %s34
      %s37 = sshll.u32 [#allocation7], 4
      %s38 = int_to_ptr.vmem [resolvable:$true] %s37
      %40 = dma.hbm_to_vmem [thread:$0]  %s2, 128, %s38, [#allocation6]
    $region13: #{tpu_custom_call.1} parent=1 // pred_fallthru
      _
    // Predicated region
    $region14: #{tpu_custom_call.1} parent=1 // pred_check
      _
    $region15: #{tpu_custom_call.1} parent=1 // pred_check_branch
      %42 = sbr.rel (0) target = $region17
    $region16: #{tpu_custom_call.1} parent=1 // pred_region
      %43 = dma.done [#allocation3], 128
    $region17: #{tpu_custom_call.1} parent=1 // pred_fallthru
      _
    // Predicated region
    $region18: #{tpu_custom_call.1} parent=1 // pred_check
      _
    $region19: #{tpu_custom_call.1} parent=1 // pred_check_branch
      %45 = sbr.rel (0) target = $region21
    $region20: #{tpu_custom_call.1} parent=1 // pred_region
      %46 = dma.done [#allocation6], 128
    $region21: #{tpu_custom_call.1} parent=1 // pred_fallthru
      _
    // Predicated region
    $region22: #{tpu_custom_call.1} parent=1 // pred_check
      _
    $region23: #{tpu_custom_call.1} parent=1 // pred_check_branch
      %48 = sbr.rel (0) target = $region25
    $region24: #{tpu_custom_call.1} parent=1 // pred_region
      %49 = dma.done [#allocation6], 128
    $region25: #{tpu_custom_call.1} parent=1 // pred_fallthru
      _
    %v50 = vld [vmem:[#allocation7] sm:$0xff]
    %v51 = vlaneseq
    %v52 = vand.u32 %v51, 127
    %53 = vset.pattern.permute.xlu0 0
    %54 = vperm.xlu0 %53, %v50
    %v55 = vpop.permute.xlu0 %54
    %vm56 = vcmp.eq.s32.totalorder %v52, %v55
    %s57 = smul.u32 0, 8
    %v58 = vlaneseq
    %v59 = vshrl.u32 %v58, 7
    %v60 = vstv %s57
    %v61 = vadd.s32 %v60, %v59
    %vm62 = vcmp.lt.s32.totalorder %v61, 8
    %v63 = vld [vmem:[#allocation2] sm:$0xff]
    %vm64 = vcmask 261120
    %v65 = vsel %vm64, %v63, -inf
    %66 = vmax.xlane.f32.xlu0 %v65
    %v67 = vpop.xlane.xlu0 %66
    %v68 = vsub.f32 %v63, %v67
    %v69 = vmul.f32 %v68, 1.442695
    %v70 = vpow.pop %v69
    %v71 = vsel %vm64, %v70, 0.0
    %72 = vadd.xlane.f32.xlu0 %v71
    %v73 = vpop.xlane.xlu0 %72
    %v74 = vlog2.pop %v73
    %v75 = vmul.f32 %v74, 0.6931472
    %v76 = vsel %vm56, %v68, 0.0
    %v77 = vsel %vm64, %v76, 0.0
    %78 = vadd.xlane.f32.xlu0 %v77
    %v79 = vpop.xlane.xlu0 %78
    %v80 = vsub.f32 %v75, %v79
    %v81 = vld [vmem:[#allocation5] sm:$0xff]
    %v82 = vsel %vm64, %v81, -inf
    %83 = vmax.xlane.f32.xlu0 %v82
    %v84 = vpop.xlane.xlu0 %83
    %v85 = vsub.f32 %v81, %v84
    %v86 = vmul.f32 %v85, 1.442695
    %v87 = vpow.pop %v86
    %v88 = vsel %vm64, %v87, 0.0
    %89 = vadd.xlane.f32.xlu0 %v88
    %v90 = vpop.xlane.xlu0 %89
    %v91 = vlog2.pop %v90
    %v92 = vmul.f32 %v91, 0.6931472
    %v93 = vsel %vm56, %v85, 0.0
    %v94 = vsel %vm64, %v93, 0.0
    %95 = vadd.xlane.f32.xlu0 %v94
    %v96 = vpop.xlane.xlu0 %95
    %v97 = vsub.f32 %v92, %v96
    %v98 = vadd.f32 %v80, %v97
    %v99 = vsel %vm62, %v98, 0.0
    %vm100 = vcmask 7168
    %v101 = vsel %vm100, %v99, 0.0
    %102 = vadd.xlane.f32.xlu0 %v101
    %v103 = vpop.xlane.xlu0 %102
    %v104 = vrot.slane %v103, 4
    %v105 = vadd.f32 %v103, %v104
    %v106 = vrot.slane %v105, 2
    %v107 = vadd.f32 %v105, %v106
    %v108 = vrot.slane %v107, 1
    %v109 = vadd.f32 %v107, %v108
    %s110 = vtos %v109
    %v111 = vstv %s110
    %vm112 = vcmask 0
    %113 = vst.msk [vmem:[#allocation8] sm:$0x1] %vm112, %v111
    // Predicated region
    $region26: #{tpu_custom_call.1} parent=1 // pred_check
      _
    $region27: #{tpu_custom_call.1} parent=1 // pred_check_branch
      %115 = sbr.rel (0) target = $region29
    $region28: #{tpu_custom_call.1} parent=1 // pred_region
      %s117 = ssub.s32 16, 16
      %118 = vsyncadd [#allocation4], %s117
      %s120 = sshll.u32 [#allocation8], 4
      %s121 = int_to_ptr.vmem [resolvable:$true] %s120
      %123 = dma.vmem_to_hbm [thread:$0]  %s121, 16, %s3, [#allocation4]
    $region29: #{tpu_custom_call.1} parent=1 // pred_fallthru
      _
    // Predicated region
    $region30: #{tpu_custom_call.1} parent=1 // pred_check
      _
    $region31: #{tpu_custom_call.1} parent=1 // pred_check_branch
      %125 = sbr.rel (0) target = $region33
    $region32: #{tpu_custom_call.1} parent=1 // pred_region
      %126 = dma.done [#allocation4], 16
    $region33: #{tpu_custom_call.1} parent=1 // pred_fallthru
      _
    %127 = vsyncpa [#allocation3], 1
    %128 = vsyncpa [#allocation6], 1
    %129 = vsyncpa [#allocation4], 1

</llo_original>
